<compile_context>
chip_gen: v5e
topology: v5e:2x2
jax: 0.10.0
libtpu: 0.0.40
codegen_flags: <defaults>
</compile_context>

<pallas_src>
import numpy as np
import jax
import jax.numpy as jnp
from jax.experimental import pallas as pl
from jax.experimental.pallas import tpu as pltpu

_LANE = 128
_TARGET_TILE_BYTES = 4 << 20      # ~4 MiB per pipeline buffer
_VMEM_LIMIT_BYTES = 32 << 20      # safe on v5e/v6e (128 MiB phys) and v7x (64 MiB phys)


def _identity_kernel(x_ref, o_ref):
    # Entire "forward" of the base class: pass the tile through unchanged.
    o_ref[...] = x_ref[...]


def _sublane_multiple(dtype) -> int:
    """Minimum second-to-last block dim per dtype (sub-32-bit packs along sublanes)."""
    itemsize = jnp.dtype(dtype).itemsize
    return {4: 8, 2: 16, 1: 32}.get(itemsize, 8)


def _pick_tile_rows(rows: int, row_bytes: int, sub: int) -> int:
    """Largest tile_r (multiple of `sub`, dividing `rows`) under the VMEM budget.

    Falls back to the full row extent, which is always layout-legal regardless
    of divisibility by the (8,128) tiling rules.
    """
    budget = max(sub, _TARGET_TILE_BYTES // max(row_bytes, 1))
    budget = (budget // sub) * sub
    if budget >= rows:
        return rows
    tr = budget
    while tr >= sub:
        if rows % tr == 0:
            return tr
        tr -= sub
    return rows


def module_base_forward(x: jax.Array) -> jax.Array:
    """Pallas identity kernel standing in for Module_base.forward().

    Accepts any shape/dtype; internally views the array as a lane-dense 2-D
    slab, runs a single-pass aliased copy, and restores the original shape.
    """
    orig_shape = x.shape

    # View as 2-D [rows, cols] with cols on the 128-lane axis.
    if x.ndim == 0:
        x2d = x.reshape(1, 1)
    elif x.ndim == 1:
        x2d = x.reshape(1, -1)
    else:
        x2d = x.reshape(-1, orig_shape[-1])

    # Prefer a fully lane-dense view so stores are unmasked full-lane `vst`.
    total = x2d.size
    if total > 0 and x2d.shape[-1] % _LANE != 0 and total % _LANE == 0:
        x2d = x2d.reshape(total // _LANE, _LANE)

    R, C = x2d.shape
    sub = _sublane_multiple(x2d.dtype)
    row_bytes = C * jnp.dtype(x2d.dtype).itemsize
    tile_r = _pick_tile_rows(R, row_bytes, sub)

    grid = (R // tile_r,)

    y2d = pl.pallas_call(
        _identity_kernel,
        out_shape=jax.ShapeDtypeStruct((R, C), x2d.dtype),
        grid=grid,
        in_specs=[pl.BlockSpec((tile_r, C), lambda i: (i, 0))],
        out_specs=pl.BlockSpec((tile_r, C), lambda i: (i, 0)),
        # Identity path: alias the output onto the input HBM buffer — no second
        # allocation, and the copy is effectively free when XLA honors the alias.
        input_output_aliases={0: 0},
        compiler_params=pltpu.CompilerParams(
            dimension_semantics=("parallel",),   # shards row-grid across TCs on v7x
            vmem_limit_bytes=_VMEM_LIMIT_BYTES,
        ),
    )(x2d)

    return y2d.reshape(orig_shape)


if __name__ == "__main__":
    # Deterministic small input. Module_base declares no parameters/weights
    # (its __init__ only stores an optimizer factory, criterion config, and a
    # model path), so there is nothing to initialize beyond the input itself.
    key = jax.random.PRNGKey(0)
    x = jax.random.normal(key, (2, 4, 16, 16), dtype=jnp.float32)

    # Snapshot to host BEFORE the call: the kernel aliases (donates) the input
    # buffer, so the device copy of `x` may be invalidated afterwards.
    x_host = np.asarray(jax.device_get(x))

    y = module_base_forward(x)
    y = jax.block_until_ready(y)

    y_host = np.asarray(jax.device_get(y))
    assert y_host.shape == x_host.shape and y_host.dtype == x_host.dtype
    assert np.allclose(y_host, x_host)

    print("KERNEL_OK")
</pallas_src>

<mosaic_0001>
module attributes {stable_mosaic.version = 11 : i64} {
  func.func @_identity_kernel(%arg0: i32, %arg1: memref<16x128xf32, #tpu.memory_space<vmem>>, %arg2: memref<16x128xf32, #tpu.memory_space<vmem>>) attributes {dimension_semantics = [#tpu.dimension_semantics<parallel>], iteration_bounds = array<i64: 1>, scalar_prefetch = 0 : i64, scratch_operands = 0 : i64, tpu.core_type = #tpu.core_type<tc>, window_params = [{transform_indices = @transform_0, window_bounds = array<i64: 16, 128>}, {transform_indices = @transform_1, window_bounds = array<i64: 16, 128>}]} {
    %c0 = arith.constant 0 : index
    %c0_0 = arith.constant 0 : index
    %0 = vector.load %arg1[%c0, %c0_0] : memref<16x128xf32, #tpu.memory_space<vmem>>, vector<16x128xf32>
    %c0_1 = arith.constant 0 : index
    %c0_2 = arith.constant 0 : index
    %1 = vector.load %arg2[%c0_1, %c0_2] : memref<16x128xf32, #tpu.memory_space<vmem>>, vector<16x128xf32>
    tpu.vector_store %arg2[%c0_1, %c0_2], %0 {strides = array<i32>} : memref<16x128xf32, #tpu.memory_space<vmem>>, vector<16x128xf32>,
    return
  }
  func.func @transform_0(%arg0: i32) -> (i32, i32) {
    %c0_i32 = arith.constant 0 : i32
    %c0_i32_0 = arith.constant 0 : i32
    return %arg0, %c0_i32 : i32, i32
  }
  func.func @transform_1(%arg0: i32) -> (i32, i32) {
    %c0_i32 = arith.constant 0 : i32
    %c0_i32_0 = arith.constant 0 : i32
    return %arg0, %c0_i32 : i32, i32
  }
}

</mosaic_0001>

<llo_original>
// kernel: tpu_custom_call.1
$region0: #{tpu_custom_call.1}
  #allocation0 [shape = 'u32[]', space=smem, size = 0x4, offset = 0x4, fixed_abs, tag = 'smem constant byte address 0x4 - core index']
  #allocation1 [shape = 'u32[72,128]{1,0:T(1,128)}', space=vmem, size = 0x9000, scoped, tag = 'internal scratch']
  %s0 = inlined_call_operand.hbm [shape: f32[16,128], index: 0, kind: input, shape index: {}, may-alias: {0,1}]
  %s1 = inlined_call_operand.hbm [shape: f32[16,128], index: 1, kind: output, shape index: {}, may-alias: {0,1}]
  %s2 = sld [smem:[#allocation0]]
  $region18: #{tpu_custom_call.1} parent=0
    _
  %s4 = ssub.s32 1, %s2
  %s5 = scalar_select 0, %s4, %s2
  $region1: #{tpu_custom_call.1} parent=0
    #allocation2 [shape = 'u8[8192]{0}', space=vmem, size = 0x2000, scoped, tag = 'input window, operand 0, single buffered']
    #allocation3 [shape = 's32[1]{0}', space=sflag, size = 0x4, scoped, tag = 'scoped memory for tpu_custom_call.1']
    #allocation4 [shape = 's32[1]{0}', space=sflag, size = 0x4, scoped, tag = 'scoped memory for tpu_custom_call.1']
    #allocation5 [shape = 'u8[8192]{0}', space=vmem, size = 0x2000, scoped, tag = 'output window, operand 0, single buffered']
    %6 = vsyncpa [#allocation3], 0
    %7 = vsyncpa [#allocation4], 0
    // Predicated region
    $region2: #{tpu_custom_call.1} parent=1 // pred_check
      _
    $region3: #{tpu_custom_call.1} parent=1 // pred_check_branch
      %9 = sbr.rel (0) target = $region5
    $region4: #{tpu_custom_call.1} parent=1 // pred_region
      %11 = vsyncadd [#allocation3], 0
      %s12 = sshll.u32 %s0, 4
      %s13 = int_to_ptr.hbm [resolvable:$true] %s12
      %s14 = sshll.u32 [#allocation2], 4
      %s15 = int_to_ptr.vmem [resolvable:$true] %s14
      %20 = dma.hbm_to_vmem [thread:$0]  %s13, 256, %s15, [#allocation3], 128, 128, 8
    $region5: #{tpu_custom_call.1} parent=1 // pred_fallthru
      _
    // Predicated region
    $region6: #{tpu_custom_call.1} parent=1 // pred_check
      _
    $region7: #{tpu_custom_call.1} parent=1 // pred_check_branch
      %22 = sbr.rel (0) target = $region9
    $region8: #{tpu_custom_call.1} parent=1 // pred_region
      %24 = dma.done [#allocation3], 256
    $region9: #{tpu_custom_call.1} parent=1 // pred_fallthru
      _
    %v25 = vld [vmem:[#allocation2] sm:$0xff]
    %v26 = vld [vmem:[#allocation2 + $0x8] sm:$0xff]
    %27 = vst [vmem:[#allocation5] sm:$0xff] %v25
    %28 = vst [vmem:[#allocation5 + $0x8] sm:$0xff] %v26
    // Predicated region
    $region10: #{tpu_custom_call.1} parent=1 // pred_check
      _
    $region11: #{tpu_custom_call.1} parent=1 // pred_check_branch
      %30 = sbr.rel (0) target = $region13
    $region12: #{tpu_custom_call.1} parent=1 // pred_region
      %32 = vsyncadd [#allocation4], 0
      %s33 = sshll.u32 [#allocation5], 4
      %s34 = int_to_ptr.vmem [resolvable:$true] %s33
      %s35 = sshll.u32 %s1, 4
      %s36 = int_to_ptr.hbm [resolvable:$true] %s35
      %41 = dma.vmem_to_hbm [thread:$0]  %s34, 256, %s36, [#allocation4], 128, 128, 8
    $region13: #{tpu_custom_call.1} parent=1 // pred_fallthru
      _
    // Predicated region
    $region14: #{tpu_custom_call.1} parent=1 // pred_check
      _
    $region15: #{tpu_custom_call.1} parent=1 // pred_check_branch
      %43 = sbr.rel (0) target = $region17
    $region16: #{tpu_custom_call.1} parent=1 // pred_region
      %45 = dma.done [#allocation4], 256
    $region17: #{tpu_custom_call.1} parent=1 // pred_fallthru
      _
    %46 = vsyncpa [#allocation3], 1
    %47 = vsyncpa [#allocation4], 1

</llo_original>
